<compile_context>
chip_gen: v5e
topology: v5e:2x2
jax: 0.10.0
libtpu: 0.0.40
codegen_flags: <defaults>
</compile_context>

<pallas_src>
import numpy as np
import jax
import jax.numpy as jnp
from jax.experimental import pallas as pl
from jax.experimental.pallas import tpu as pltpu

TEMP = 0.05
INV_TEMP = 1.0 / TEMP
EPS_SOFTMAX = 1e-6
EPS_LOG = 1e-6
EPS_NORM = 1e-12


def _round_up(v, m):
    return ((v + m - 1) // m) * m


def _vmem_limit_bytes(needed):
    """Generation-aware scoped-VMEM limit (v5e/v6e: 128 MiB phys, v7x: 64 MiB/TC)."""
    try:
        phys = pltpu.get_tpu_info().vmem_capacity_bytes
    except Exception:
        phys = 64 * 2 ** 20                      # conservative (v7x per-TC) fallback
    cap = int(phys * 0.45)                        # headroom for compiler scratch
    want = int(needed * 1.5) + (4 << 20)
    return int(min(max(want, 16 << 20), cap))


# ---------------------------------------------------------------------------
# Kernel 1: class-centroid sums  cent[d, c] = sum_{s: labels[s]==c} feat[s, d].
# Streams the memory bank once; one-hot built in-kernel from int32 labels.
# ---------------------------------------------------------------------------
def centroid_kernel(featT_ref, lbl_ref, cent_ref, acc_ref):
    n = pl.program_id(1)

    @pl.when(n == 0)
    def _init():
        acc_ref[...] = jnp.zeros_like(acc_ref)

    tile_n = lbl_ref.shape[0]
    num_classes = acc_ref.shape[1]
    class_ids = jax.lax.broadcasted_iota(jnp.int32, (tile_n, num_classes), 1)
    onehot = (lbl_ref[...] == class_ids).astype(jnp.bfloat16)       # exact 0/1
    acc_ref[...] += jnp.dot(featT_ref[...], onehot,
                            preferred_element_type=jnp.float32)

    @pl.when(n == pl.num_programs(1) - 1)
    def _finalize():
        cent_ref[...] = acc_ref[...]


def class_centroids(featT, labels_col, *, num_classes_p, tile_n, n_split):
    Dp, Np = featT.shape
    Cp = num_classes_p
    assert Np % (tile_n * n_split) == 0
    n_per = Np // (tile_n * n_split)

    vmem_need = (2 * Dp * tile_n * 2          # featT block, double-buffered
                 + 2 * tile_n * 4             # labels block
                 + 2 * Dp * Cp * 4            # output block buffers
                 + Dp * Cp * 4                # accumulator scratch
                 + tile_n * Cp * 2)           # in-kernel one-hot temporary
    cost = pl.CostEstimate(
        flops=int(2 * Dp * Np * Cp),
        transcendentals=0,
        bytes_accessed=int(Dp * Np * 2 + Np * 4 + n_split * Dp * Cp * 4),
    )

    partials = pl.pallas_call(
        centroid_kernel,
        out_shape=jax.ShapeDtypeStruct((n_split, Dp, Cp), jnp.float32),
        grid_spec=pltpu.PrefetchScalarGridSpec(
            num_scalar_prefetch=0,
            grid=(n_split, n_per),
            in_specs=[
                pl.BlockSpec((Dp, tile_n), lambda s, n: (0, s * n_per + n)),
                pl.BlockSpec((tile_n, 1), lambda s, n: (s * n_per + n, 0)),
            ],
            out_specs=pl.BlockSpec((None, Dp, Cp), lambda s, n: (s, 0, 0)),
            scratch_shapes=[pltpu.VMEM((Dp, Cp), jnp.float32)],
        ),
        compiler_params=pltpu.CompilerParams(
            dimension_semantics=("parallel", "arbitrary"),
            vmem_limit_bytes=_vmem_limit_bytes(vmem_need),
        ),
        cost_estimate=cost,
    )(featT, labels_col)
    return jnp.sum(partials, axis=0)              # tiny (n_split, D, C) combine


# ---------------------------------------------------------------------------
# Kernel 2: per-batch normalize + sim + masked softmax + NLL partial sums.
# ---------------------------------------------------------------------------
def hm_batch_kernel(x_ref, cent_ref, counts_ref, tgt_ref, out_ref):
    # F.normalize(inputs, dim=1) with eps=1e-12
    x = x_ref[...]
    ssq = jnp.sum(x * x, axis=1, keepdims=True)
    inv = jax.lax.rsqrt(jnp.maximum(ssq, EPS_NORM * EPS_NORM))
    xn = x * inv

    # sim[b,c] = (xn[b]·centroid[c]) / temp / max(counts[c],1)   (f32, no bf16 cast)
    sim = jnp.dot(xn, cent_ref[...], preferred_element_type=jnp.float32)
    counts = counts_ref[...]
    mask = (counts > 0.0).astype(jnp.float32)
    den = jnp.where(counts > 0.0, counts, 1.0)
    sim = sim * (INV_TEMP / den)

    # masked softmax + log (exact division: runs once per B tile, essentially free)
    exps = jnp.exp(sim) * mask
    sums = jnp.sum(exps, axis=1, keepdims=True) + EPS_SOFTMAX
    logp = jnp.log(exps / sums + EPS_LOG)

    # NLL partial sums over valid (non-ignored) rows
    tgt = tgt_ref[...]
    total = jnp.sum(-logp * tgt)
    count = jnp.sum(tgt)
    row = jax.lax.broadcasted_iota(jnp.int32, out_ref.shape, 1)
    out_ref[...] = jnp.where(row == 0, total, count)   # sublane 0: sum, sublane 1: count


def hybrid_memory_loss(x, featT, labels_col, counts, tgt_onehot, *,
                       num_classes_p, tile_b, tile_n, n_split):
    Bp, Dp = x.shape
    Cp = num_classes_p
    assert Bp % tile_b == 0
    b_tiles = Bp // tile_b

    centroids = class_centroids(featT, labels_col, num_classes_p=Cp,
                                tile_n=tile_n, n_split=n_split)

    vmem_need = (2 * tile_b * Dp * 4 + 2 * Dp * Cp * 4 + 2 * Cp * 4
                 + 2 * tile_b * Cp * 4 + 2 * 2 * 128 * 4
                 + 4 * tile_b * Cp * 4)            # headroom for f32 temporaries
    cost = pl.CostEstimate(
        flops=int(2 * Bp * Dp * Cp + 8 * Bp * Cp),
        transcendentals=int(2 * Bp * Cp + Bp),
        bytes_accessed=int(Bp * Dp * 4 + b_tiles * (Dp * Cp * 4 + Cp * 4)
                           + Bp * Cp * 4 + b_tiles * 2 * 128 * 4),
    )

    out = pl.pallas_call(
        hm_batch_kernel,
        out_shape=jax.ShapeDtypeStruct((b_tiles, 2, 128), jnp.float32),
        grid_spec=pltpu.PrefetchScalarGridSpec(
            num_scalar_prefetch=0,
            grid=(b_tiles,),
            in_specs=[
                pl.BlockSpec((tile_b, Dp), lambda b: (b, 0)),    # inputs (f32)
                pl.BlockSpec((Dp, Cp), lambda b: (0, 0)),        # centroid sums (f32)
                pl.BlockSpec((1, Cp), lambda b: (0, 0)),         # class counts (f32)
                pl.BlockSpec((tile_b, Cp), lambda b: (b, 0)),    # target one-hot * valid
            ],
            out_specs=pl.BlockSpec((1, 2, 128), lambda b: (b, 0, 0)),
        ),
        compiler_params=pltpu.CompilerParams(
            dimension_semantics=("parallel",),
            vmem_limit_bytes=_vmem_limit_bytes(vmem_need),
        ),
        cost_estimate=cost,
    )(x, centroids, counts, tgt_onehot)

    # Tiny scalar epilogue (mean over valid rows, NaN/empty -> 0) in the wrapper.
    total = jnp.sum(out[:, 0, 0])
    count = jnp.sum(out[:, 1, 0])
    loss = jnp.where(count > 0, total / jnp.maximum(count, 1.0), 0.0)
    loss = jnp.where(jnp.isnan(loss), jnp.float32(0.0), loss)    # nan -> 0 (ref behavior)
    return loss


if __name__ == "__main__":
    # ---- module config (small, consistent with HybridMemory.__init__) ----
    num_features = 32
    num_samples = 64
    source_classes = 8
    is_source = True

    key = jax.random.PRNGKey(0)
    kf, kl, kx, ki = jax.random.split(key, 4)

    # Registered buffers (the module inits them to zero, which is degenerate;
    # initialize deterministically in-script instead).
    features = jax.random.normal(kf, (num_samples, num_features), jnp.float32)
    features = features / jnp.linalg.norm(features, axis=1, keepdims=True)
    labels = np.asarray(
        jax.random.randint(kl, (num_samples,), 0, source_classes), dtype=np.int64)

    # Example forward inputs.
    batch = 8
    inputs = jax.random.normal(kx, (batch, num_features), jnp.float32)
    raw = np.asarray(
        jax.random.randint(ki, (batch,), 0, num_samples + 1), dtype=np.int64)
    raw[0] = 0                                    # filtered out (index - 1 < 0)
    indexes_list = [raw[: batch // 2], raw[batch // 2:]]   # mimics list of tensors

    # ---- host glue (data-dependent shapes): cat / -1 / filter / ==5554 remap ----
    idx = np.concatenate(indexes_list) - 1
    inds = idx >= 0
    idx = idx[inds]
    if is_source:
        idx = np.where(idx == 5554, source_classes - 1, idx)
    x_np = np.asarray(inputs)[inds]                            # (Bf, D)
    Bf, D = x_np.shape

    targets = labels[idx]                                      # (Bf,)
    num_classes = int(labels.max()) + 1                        # labels.max() + 1
    counts = np.bincount(labels, minlength=num_classes).astype(np.float32)
    valid = (targets != (source_classes - 1)).astype(np.float32)   # ignore_index mask
    tgt_onehot = (targets[:, None] == np.arange(num_classes)[None, :]).astype(np.float32)
    tgt_onehot *= valid[:, None]                               # fold ignore_index in

    # ---- TPU-friendly padding / tiling (zero padding is loss-neutral) ----
    Dp = _round_up(D, 128)
    Cp = _round_up(num_classes, 128)

    # memory-bank tile: as large as a conservative (v7x-safe) VMEM budget allows
    tile_n = min(_round_up(num_samples, 128), 2048)
    while tile_n > 128 and (2 * Dp * tile_n * 2 + tile_n * Cp * 2) > (24 << 20):
        tile_n = max(128, (tile_n // 2) // 128 * 128)
    n_split = 2 if _round_up(num_samples, tile_n) // tile_n >= 2 else 1   # megacore
    Np = _round_up(num_samples, tile_n * n_split)

    # single B tile whenever it fits VMEM (the bank is no longer re-streamed per tile)
    tile_b = _round_up(max(Bf, 1), 8)
    while tile_b > 8 and 2 * tile_b * (Dp + Cp) * 4 > (16 << 20):
        tile_b = _round_up(tile_b // 2, 8)
    Bp = _round_up(max(Bf, 1), tile_b)

    x_p = np.zeros((Bp, Dp), np.float32); x_p[:Bf, :D] = x_np
    featT_p = np.zeros((Dp, Np), np.float32)
    featT_p[:D, :num_samples] = np.asarray(features).T
    labels_p = np.full((Np, 1), -1, np.int32)                  # -1 matches no class
    labels_p[:num_samples, 0] = labels
    counts_p = np.zeros((1, Cp), np.float32); counts_p[0, :num_classes] = counts
    tgt_p = np.zeros((Bp, Cp), np.float32); tgt_p[:Bf, :num_classes] = tgt_onehot

    # TODO(synk): HM.backward's momentum feature-bank update is a gradient-time
    # side effect and is intentionally not implemented in this forward kernel.
    loss = hybrid_memory_loss(
        jnp.asarray(x_p, jnp.float32),
        jnp.asarray(featT_p, jnp.bfloat16),     # memory bank streamed once, bf16
        jnp.asarray(labels_p, jnp.int32),       # int32 labels -> one-hot built in-kernel
        jnp.asarray(counts_p, jnp.float32),
        jnp.asarray(tgt_p, jnp.float32),
        num_classes_p=Cp, tile_b=tile_b, tile_n=tile_n, n_split=n_split,
    )
    loss = jax.block_until_ready(loss)
    assert np.isfinite(float(loss))
    print("KERNEL_OK")
</pallas_src>

<mosaic_0001>
module attributes {stable_mosaic.version = 11 : i64} {
  func.func @centroid_kernel(%arg0: i32, %arg1: i32, %arg2: memref<128x128xbf16, #tpu.memory_space<vmem>>, %arg3: memref<128x1xi32, #tpu.memory_space<vmem>>, %arg4: memref<1x128x128xf32, #tpu.memory_space<vmem>>, %arg5: memref<128x128xf32, #tpu.memory_space<vmem>>) attributes {dimension_semantics = [#tpu.dimension_semantics<parallel>, #tpu.dimension_semantics<arbitrary>], iteration_bounds = array<i64: 1, 1>, scalar_prefetch = 0 : i64, scratch_operands = 1 : i64, tpu.core_type = #tpu.core_type<tc>, window_params = [{transform_indices = @transform_0, window_bounds = array<i64: 128, 128>}, {transform_indices = @transform_1, window_bounds = array<i64: 128, 1>}, {transform_indices = @transform_2, window_bounds = array<i64: 1, 128, 128>}]} {
    %c0_i32 = arith.constant 0 : i32
    %0 = arith.cmpi eq, %arg1, %c0_i32 : i32
    %1 = arith.extui %0 : i1 to i32
    %c0_i32_0 = arith.constant 0 : i32
    %2 = arith.cmpi ne, %1, %c0_i32_0 : i32
    scf.if %2 {
      %cst_10 = arith.constant 0.000000e+00 : f32
      %18 = vector.broadcast %cst_10 : f32 to vector<128x128xf32>
      %c0_11 = arith.constant 0 : index
      %c0_12 = arith.constant 0 : index
      %19 = vector.load %arg5[%c0_11, %c0_12] : memref<128x128xf32, #tpu.memory_space<vmem>>, vector<128x128xf32>
      tpu.vector_store %arg5[%c0_11, %c0_12], %18 {strides = array<i32>} : memref<128x128xf32, #tpu.memory_space<vmem>>, vector<128x128xf32>,
    } else {
    }
    %3 = tpu.iota {dimensions = array<i32: 1>} : vector<128x128xi32>
    %c0 = arith.constant 0 : index
    %c0_1 = arith.constant 0 : index
    %4 = vector.load %arg3[%c0, %c0_1] : memref<128x1xi32, #tpu.memory_space<vmem>>, vector<128x1xi32>
    %5 = vector.broadcast %4 : vector<128x1xi32> to vector<128x128xi32>
    %6 = arith.cmpi eq, %5, %3 : vector<128x128xi32>
    %7 = arith.extui %6 : vector<128x128xi1> to vector<128x128xi32>
    %8 = arith.sitofp %7 : vector<128x128xi32> to vector<128x128xf32>
    %9 = arith.truncf %8 : vector<128x128xf32> to vector<128x128xbf16>
    %c0_2 = arith.constant 0 : index
    %c0_3 = arith.constant 0 : index
    %10 = vector.load %arg5[%c0_2, %c0_3] : memref<128x128xf32, #tpu.memory_space<vmem>>, vector<128x128xf32>
    %c0_4 = arith.constant 0 : index
    %c0_5 = arith.constant 0 : index
    %11 = vector.load %arg2[%c0_4, %c0_5] : memref<128x128xbf16, #tpu.memory_space<vmem>>, vector<128x128xbf16>
    %cst = arith.constant dense<0.000000e+00> : vector<128x128xf32>
    %12 = tpu.matmul %11, %9, %cst {dimension_numbers = #tpu.dot_dimension_numbers<[1], [0], [0], [1], [0, 0, 1, 1], [], []>} : vector<128x128xbf16>, vector<128x128xbf16>, vector<128x128xf32> -> vector<128x128xf32>
    %13 = arith.addf %10, %12 : vector<128x128xf32>
    %c0_6 = arith.constant 0 : index
    %c0_7 = arith.constant 0 : index
    %14 = vector.load %arg5[%c0_6, %c0_7] : memref<128x128xf32, #tpu.memory_space<vmem>>, vector<128x128xf32>
    tpu.vector_store %arg5[%c0_6, %c0_7], %13 {strides = array<i32>} : memref<128x128xf32, #tpu.memory_space<vmem>>, vector<128x128xf32>,
    %c0_i32_8 = arith.constant 0 : i32
    %15 = arith.cmpi eq, %arg1, %c0_i32_8 : i32
    %16 = arith.extui %15 : i1 to i32
    %c0_i32_9 = arith.constant 0 : i32
    %17 = arith.cmpi ne, %16, %c0_i32_9 : i32
    scf.if %17 {
      %c0_10 = arith.constant 0 : index
      %c0_11 = arith.constant 0 : index
      %18 = vector.load %arg5[%c0_10, %c0_11] : memref<128x128xf32, #tpu.memory_space<vmem>>, vector<128x128xf32>
      %c0_12 = arith.constant 0 : index
      %c0_13 = arith.constant 0 : index
      %c0_14 = arith.constant 0 : index
      %19 = vector.load %arg4[%c0_12, %c0_13, %c0_14] : memref<1x128x128xf32, #tpu.memory_space<vmem>>, vector<1x128x128xf32>
      %20 = vector.shape_cast %19 : vector<1x128x128xf32> to vector<128x128xf32>
      %21 = vector.shape_cast %18 : vector<128x128xf32> to vector<1x128x128xf32>
      tpu.vector_store %arg4[%c0_12, %c0_13, %c0_14], %21 {strides = array<i32>} : memref<1x128x128xf32, #tpu.memory_space<vmem>>, vector<1x128x128xf32>,
    } else {
    }
    return
  }
  func.func @transform_0(%arg0: i32, %arg1: i32) -> (i32, i32) {
    %c1_i32 = arith.constant 1 : i32
    %0 = arith.muli %arg0, %c1_i32 : i32
    %1 = arith.addi %0, %arg1 : i32
    %c0_i32 = arith.constant 0 : i32
    %c0_i32_0 = arith.constant 0 : i32
    return %c0_i32, %1 : i32, i32
  }
  func.func @transform_1(%arg0: i32, %arg1: i32) -> (i32, i32) {
    %c1_i32 = arith.constant 1 : i32
    %0 = arith.muli %arg0, %c1_i32 : i32
    %1 = arith.addi %0, %arg1 : i32
    %c0_i32 = arith.constant 0 : i32
    %c0_i32_0 = arith.constant 0 : i32
    return %1, %c0_i32 : i32, i32
  }
  func.func @transform_2(%arg0: i32, %arg1: i32) -> (i32, i32, i32) {
    %c0_i32 = arith.constant 0 : i32
    %c0_i32_0 = arith.constant 0 : i32
    %c0_i32_1 = arith.constant 0 : i32
    return %arg0, %c0_i32, %c0_i32_0 : i32, i32, i32
  }
}

</mosaic_0001>

<llo_original>
// kernel: tpu_custom_call.1
$region0: #{tpu_custom_call.1}
  #allocation0 [shape = 'u32[]', space=smem, size = 0x4, offset = 0x4, fixed_abs, tag = 'smem constant byte address 0x4 - core index']
  #allocation1 [shape = 'u32[72,128]{1,0:T(1,128)}', space=vmem, size = 0x9000, scoped, tag = 'internal scratch']
  #allocation2 [shape = 'f32[128,128]{1,0:T(8,128)}', space=vmem, size = 0x10000, scoped, tag = 'scratch operand']
  %s0 = inlined_call_operand.vmem [shape: bf16[128,128], index: 0, kind: input, shape index: {}]
  %s1 = inlined_call_operand.vmem [shape: s32[128,1], index: 1, kind: input, shape index: {}]
  %s2 = inlined_call_operand.hbm [shape: f32[1,128,128], index: 2, kind: output, shape index: {}]
  %s3 = sld [smem:[#allocation0]]
  $region26: #{tpu_custom_call.1} parent=0
    _
  %s5 = ssub.s32 1, %s3
  %s6 = scalar_select 0, %s5, %s3
  $region1: #{tpu_custom_call.1} parent=0
    #allocation3 [shape = 'u8[65536]{0}', space=vmem, size = 0x10000, scoped, tag = 'output window, operand 0, single buffered']
    #allocation4 [shape = 's32[1]{0}', space=sflag, size = 0x4, scoped, tag = 'scoped memory for tpu_custom_call.1']
    %7 = vsyncpa [#allocation4], 0
    // Predicated region
    $region2: #{tpu_custom_call.1} parent=1 // pred_check
      _
    $region3: #{tpu_custom_call.1} parent=1 // pred_check_branch
      %9 = sbr.rel (0) target = $region5
    $region4: #{tpu_custom_call.1} parent=1 // pred_region
      %s10 = sadd.s32 0, 0
      %p11 = scmp.lt.s32.totalorder %s10, 0
      %s12 = scalar_select %p11, %s10, 0
      %s13 = smul.addr %s12, 4
      %s14 = scalar_lea.vmem %s0, %s13
      %s15 = sadd.s32 0, 0
    $region5: #{tpu_custom_call.1} parent=1 // pred_fallthru
      _
    // Predicated region
    $region6: #{tpu_custom_call.1} parent=1 // pred_check
      _
    $region7: #{tpu_custom_call.1} parent=1 // pred_check_branch
      %17 = sbr.rel (0) target = $region9
    $region8: #{tpu_custom_call.1} parent=1 // pred_region
      %s18 = sadd.s32 0, 0
      %s19 = smul.u32 16, %s18
      %p20 = scmp.lt.s32.totalorder %s19, 15
      %s21 = scalar_select %p20, %s19, 15
      %s22 = smul.addr %s21, 8
      %s23 = scalar_lea.vmem %s1, %s22
      %s24 = sadd.s32 0, 0
      %s25 = smul.u32 16, %s24
    $region9: #{tpu_custom_call.1} parent=1 // pred_fallthru
      _
    %s26 = sadd.s32 0, 0
    %p27 = scmp.lt.s32.totalorder %s26, 0
    %s28 = scalar_select %p27, %s26, 0
    %s29 = smul.addr %s28, 4
    %s30 = scalar_lea.vmem %s0, %s29
    %s31 = sadd.s32 0, 0
    %s32 = smul.u32 16, %s31
    %p33 = scmp.lt.s32.totalorder %s32, 15
    %s34 = scalar_select %p33, %s32, 15
    %s35 = smul.addr %s34, 8
    %s36 = scalar_lea.vmem %s1, %s35
    %s37 = sadd.s32 0, 0
    %p38 = scmp.lt.s32.totalorder %s37, 0
    %s39 = scalar_select %p38, %s37, 0
    %s40 = smul.addr %s39, 4
    %s41 = scalar_lea.vmem %s0, %s40
    %s42 = sadd.s32 0, 0
    %s43 = sadd.s32 0, 0
    %s44 = smul.u32 16, %s43
    %p45 = scmp.lt.s32.totalorder %s44, 15
    %s46 = scalar_select %p45, %s44, 15
    %s47 = smul.addr %s46, 8
    %s48 = scalar_lea.vmem %s1, %s47
    %s49 = sadd.s32 0, 0
    %s50 = smul.u32 16, %s49
    %p51 = scmp.eq.s32.totalorder 0, 0
    // Predicated region
    $region10: #{tpu_custom_call.1} parent=1 // pred_check
      %p52 = pneg %p51
    $region11: #{tpu_custom_call.1} parent=1 // pred_check_branch
      %54 = sbr.rel (%p52) target = $region13
    $region12: #{tpu_custom_call.1} parent=1 // pred_region
      %55 = vst [vmem:[#allocation2] sm:$0xff] 0.0
      %56 = vst [vmem:[#allocation2 + $0x8] sm:$0xff] 0.0
      %57 = vst [vmem:[#allocation2 + $0x10] sm:$0xff] 0.0
      %58 = vst [vmem:[#allocation2 + $0x18] sm:$0xff] 0.0
      %59 = vst [vmem:[#allocation2 + $0x20] sm:$0xff] 0.0
      %60 = vst [vmem:[#allocation2 + $0x28] sm:$0xff] 0.0
      %61 = vst [vmem:[#allocation2 + $0x30] sm:$0xff] 0.0
      %62 = vst [vmem:[#allocation2 + $0x38] sm:$0xff] 0.0
      %63 = vst [vmem:[#allocation2 + $0x40] sm:$0xff] 0.0
      %64 = vst [vmem:[#allocation2 + $0x48] sm:$0xff] 0.0
      %65 = vst [vmem:[#allocation2 + $0x50] sm:$0xff] 0.0
      %66 = vst [vmem:[#allocation2 + $0x58] sm:$0xff] 0.0
      %67 = vst [vmem:[#allocation2 + $0x60] sm:$0xff] 0.0
      %68 = vst [vmem:[#allocation2 + $0x68] sm:$0xff] 0.0
      %69 = vst [vmem:[#allocation2 + $0x70] sm:$0xff] 0.0
      %70 = vst [vmem:[#allocation2 + $0x78] sm:$0xff] 0.0
    $region13: #{tpu_custom_call.1} parent=1 // pred_fallthru
      _
    %v71 = vlaneseq
    %v72 = vand.u32 %v71, 127
    %v73 = vld [vmem:[%s48] sm:$0xff]
    %v74 = vld [vmem:[%s48 + $0x8] sm:$0xff]
    %v75 = vld [vmem:[%s48 + $0x10] sm:$0xff]
    %v76 = vld [vmem:[%s48 + $0x18] sm:$0xff]
    %v77 = vld [vmem:[%s48 + $0x20] sm:$0xff]
    %v78 = vld [vmem:[%s48 + $0x28] sm:$0xff]
    %v79 = vld [vmem:[%s48 + $0x30] sm:$0xff]
    %v80 = vld [vmem:[%s48 + $0x38] sm:$0xff]
    %v81 = vld [vmem:[%s48 + $0x40] sm:$0xff]
    %v82 = vld [vmem:[%s48 + $0x48] sm:$0xff]
    %v83 = vld [vmem:[%s48 + $0x50] sm:$0xff]
    %v84 = vld [vmem:[%s48 + $0x58] sm:$0xff]
    %v85 = vld [vmem:[%s48 + $0x60] sm:$0xff]
    %v86 = vld [vmem:[%s48 + $0x68] sm:$0xff]
    %v87 = vld [vmem:[%s48 + $0x70] sm:$0xff]
    %v88 = vld [vmem:[%s48 + $0x78] sm:$0xff]
    %89 = vset.pattern.permute.xlu0 0
    %90 = vperm.xlu0 %89, %v73
    %v91 = vpop.permute.xlu0 %90
    %92 = vset.pattern.permute.xlu0 0
    %93 = vperm.xlu0 %92, %v74
    %v94 = vpop.permute.xlu0 %93
    %95 = vset.pattern.permute.xlu0 0
    %96 = vperm.xlu0 %95, %v75
    %v97 = vpop.permute.xlu0 %96
    %98 = vset.pattern.permute.xlu0 0
    %99 = vperm.xlu0 %98, %v76
    %v100 = vpop.permute.xlu0 %99
    %101 = vset.pattern.permute.xlu0 0
    %102 = vperm.xlu0 %101, %v77
    %v103 = vpop.permute.xlu0 %102
    %104 = vset.pattern.permute.xlu0 0
    %105 = vperm.xlu0 %104, %v78
    %v106 = vpop.permute.xlu0 %105
    %107 = vset.pattern.permute.xlu0 0
    %108 = vperm.xlu0 %107, %v79
    %v109 = vpop.permute.xlu0 %108
    %110 = vset.pattern.permute.xlu0 0
    %111 = vperm.xlu0 %110, %v80
    %v112 = vpop.permute.xlu0 %111
    %113 = vset.pattern.permute.xlu0 0
    %114 = vperm.xlu0 %113, %v81
    %v115 = vpop.permute.xlu0 %114
    %116 = vset.pattern.permute.xlu0 0
    %117 = vperm.xlu0 %116, %v82
    %v118 = vpop.permute.xlu0 %117
    %119 = vset.pattern.permute.xlu0 0
    %120 = vperm.xlu0 %119, %v83
    %v121 = vpop.permute.xlu0 %120
    %122 = vset.pattern.permute.xlu0 0
    %123 = vperm.xlu0 %122, %v84
    %v124 = vpop.permute.xlu0 %123
    %125 = vset.pattern.permute.xlu0 0
    %126 = vperm.xlu0 %125, %v85
    %v127 = vpop.permute.xlu0 %126
    %128 = vset.pattern.permute.xlu0 0
    %129 = vperm.xlu0 %128, %v86
    %v130 = vpop.permute.xlu0 %129
    %131 = vset.pattern.permute.xlu0 0
    %132 = vperm.xlu0 %131, %v87
    %v133 = vpop.permute.xlu0 %132
    %134 = vset.pattern.permute.xlu0 0
    %135 = vperm.xlu0 %134, %v88
    %v136 = vpop.permute.xlu0 %135
    %vm137 = vcmp.eq.s32.totalorder %v91, %v72
    %vm138 = vcmp.eq.s32.totalorder %v94, %v72
    %vm139 = vcmp.eq.s32.totalorder %v97, %v72
    %vm140 = vcmp.eq.s32.totalorder %v100, %v72
    %vm141 = vcmp.eq.s32.totalorder %v103, %v72
    %vm142 = vcmp.eq.s32.totalorder %v106, %v72
    %vm143 = vcmp.eq.s32.totalorder %v109, %v72
    %vm144 = vcmp.eq.s32.totalorder %v112, %v72
    %vm145 = vcmp.eq.s32.totalorder %v115, %v72
    %vm146 = vcmp.eq.s32.totalorder %v118, %v72
    %vm147 = vcmp.eq.s32.totalorder %v121, %v72
    %vm148 = vcmp.eq.s32.totalorder %v124, %v72
    %vm149 = vcmp.eq.s32.totalorder %v127, %v72
    %vm150 = vcmp.eq.s32.totalorder %v130, %v72
    %vm151 = vcmp.eq.s32.totalorder %v133, %v72
    %vm152 = vcmp.eq.s32.totalorder %v136, %v72
    %v153 = vsel %vm137, 1, 0
    %v154 = vsel %vm138, 1, 0
    %v155 = vsel %vm139, 1, 0
    %v156 = vsel %vm140, 1, 0
    %v157 = vsel %vm141, 1, 0
    %v158 = vsel %vm142, 1, 0
    %v159 = vsel %vm143, 1, 0
    %v160 = vsel %vm144, 1, 0
    %v161 = vsel %vm145, 1, 0
    %v162 = vsel %vm146, 1, 0
    %v163 = vsel %vm147, 1, 0
    %v164 = vsel %vm148, 1, 0
    %v165 = vsel %vm149, 1, 0
    %v166 = vsel %vm150, 1, 0
    %v167 = vsel %vm151, 1, 0
    %v168 = vsel %vm152, 1, 0
    %v169 = vcvt.s32.f32 %v153
    %v170 = vcvt.s32.f32 %v154
    %v171 = vcvt.s32.f32 %v155
    %v172 = vcvt.s32.f32 %v156
    %v173 = vcvt.s32.f32 %v157
    %v174 = vcvt.s32.f32 %v158
    %v175 = vcvt.s32.f32 %v159
    %v176 = vcvt.s32.f32 %v160
    %v177 = vcvt.s32.f32 %v161
    %v178 = vcvt.s32.f32 %v162
    %v179 = vcvt.s32.f32 %v163
    %v180 = vcvt.s32.f32 %v164
    %v181 = vcvt.s32.f32 %v165
    %v182 = vcvt.s32.f32 %v166
    %v183 = vcvt.s32.f32 %v167
    %v184 = vcvt.s32.f32 %v168
    %v185 = vpack.c.bf16 %v170, %v169
    %v186 = vpack.c.bf16 %v172, %v171
    %v187 = vpack.c.bf16 %v174, %v173
    %v188 = vpack.c.bf16 %v176, %v175
    %v189 = vpack.c.bf16 %v178, %v177
    %v190 = vpack.c.bf16 %v180, %v179
    %v191 = vpack.c.bf16 %v182, %v181
    %v192 = vpack.c.bf16 %v184, %v183
    %v193 = vld [vmem:[#allocation2] sm:$0xff]
    %v194 = vld [vmem:[#allocation2 + $0x8] sm:$0xff]
    %v195 = vld [vmem:[#allocation2 + $0x10] sm:$0xff]
    %v196 = vld [vmem:[#allocation2 + $0x18] sm:$0xff]
    %v197 = vld [vmem:[#allocation2 + $0x20] sm:$0xff]
    %v198 = vld [vmem:[#allocation2 + $0x28] sm:$0xff]
    %v199 = vld [vmem:[#allocation2 + $0x30] sm:$0xff]
    %v200 = vld [vmem:[#allocation2 + $0x38] sm:$0xff]
    %v201 = vld [vmem:[#allocation2 + $0x40] sm:$0xff]
    %v202 = vld [vmem:[#allocation2 + $0x48] sm:$0xff]
    %v203 = vld [vmem:[#allocation2 + $0x50] sm:$0xff]
    %v204 = vld [vmem:[#allocation2 + $0x58] sm:$0xff]
    %v205 = vld [vmem:[#allocation2 + $0x60] sm:$0xff]
    %v206 = vld [vmem:[#allocation2 + $0x68] sm:$0xff]
    %v207 = vld [vmem:[#allocation2 + $0x70] sm:$0xff]
    %v208 = vld [vmem:[#allocation2 + $0x78] sm:$0xff]
    %v209 = vld [vmem:[%s41] sm:$0xf]
    %v210 = vld [vmem:[%s41 + $0x4] sm:$0xf]
    %v211 = vld [vmem:[%s41 + $0x8] sm:$0xf]
    %v212 = vld [vmem:[%s41 + $0xc] sm:$0xf]
    %v213 = vld [vmem:[%s41 + $0x10] sm:$0xf]
    %v214 = vld [vmem:[%s41 + $0x14] sm:$0xf]
    %v215 = vld [vmem:[%s41 + $0x18] sm:$0xf]
    %v216 = vld [vmem:[%s41 + $0x1c] sm:$0xf]
    %v217 = vld [vmem:[%s41 + $0x20] sm:$0xf]
    %v218 = vld [vmem:[%s41 + $0x24] sm:$0xf]
    %v219 = vld [vmem:[%s41 + $0x28] sm:$0xf]
    %v220 = vld [vmem:[%s41 + $0x2c] sm:$0xf]
    %v221 = vld [vmem:[%s41 + $0x30] sm:$0xf]
    %v222 = vld [vmem:[%s41 + $0x34] sm:$0xf]
    %v223 = vld [vmem:[%s41 + $0x38] sm:$0xf]
    %v224 = vld [vmem:[%s41 + $0x3c] sm:$0xf]
    %v241 = vunpack.c.l.b16 %v209
    %v242 = vunpack.c.l.b16 %v210
    %v243 = vunpack.c.l.b16 %v211
    %v244 = vunpack.c.l.b16 %v212
    %v245 = vunpack.c.l.b16 %v213
    %v246 = vunpack.c.l.b16 %v214
    %v247 = vunpack.c.l.b16 %v215
    %v248 = vunpack.c.l.b16 %v216
    %v249 = vunpack.c.l.b16 %v217
    %v250 = vunpack.c.l.b16 %v218
    %v251 = vunpack.c.l.b16 %v219
    %v252 = vunpack.c.l.b16 %v220
    %v253 = vunpack.c.l.b16 %v221
    %v254 = vunpack.c.l.b16 %v222
    %v255 = vunpack.c.l.b16 %v223
    %v256 = vunpack.c.l.b16 %v224
    %v257 = vpack.c.b16 %v242, %v241
    %v258 = vpack.c.b16 %v244, %v243
    %v259 = vpack.c.b16 %v246, %v245
    %v260 = vpack.c.b16 %v248, %v247
    %v261 = vpack.c.b16 %v250, %v249
    %v262 = vpack.c.b16 %v252, %v251
    %v263 = vpack.c.b16 %v254, %v253
    %v264 = vpack.c.b16 %v256, %v255
    %273 = vmatpush.bf16.msra.mxu0 %v192
    %274 = vmatpush.bf16.msra.mxu0 %v191
    %275 = vmatpush.bf16.msra.mxu0 %v190
    %276 = vmatpush.bf16.msra.mxu0 %v189
    %277 = vmatpush.bf16.msra.mxu0 %v188
    %278 = vmatpush.bf16.msra.mxu0 %v187
    %279 = vmatpush.bf16.msra.mxu0 %v186
    %280 = vmatpush.bf16.msra.mxu0 %v185
    %281 = vmatmul.bf16.gmra.mxu0 %v257
    %v282 = vpop.f32.mrf.mxu0
    %v283 = vadd.f32 0.0, %v282
    %v284 = vpop.f32.mrf.mxu0
    %v285 = vadd.f32 0.0, %v284
    %286 = vmatmul.bf16.gmra.mxu0 %v258
    %v287 = vpop.f32.mrf.mxu0
    %v288 = vadd.f32 0.0, %v287
    %v289 = vpop.f32.mrf.mxu0
    %v290 = vadd.f32 0.0, %v289
    %291 = vmatmul.bf16.gmra.mxu0 %v259
    %v292 = vpop.f32.mrf.mxu0
    %v293 = vadd.f32 0.0, %v292
    %v294 = vpop.f32.mrf.mxu0
    %v295 = vadd.f32 0.0, %v294
    %296 = vmatmul.bf16.gmra.mxu0 %v260
    %v297 = vpop.f32.mrf.mxu0
    %v298 = vadd.f32 0.0, %v297
    %v299 = vpop.f32.mrf.mxu0
    %v300 = vadd.f32 0.0, %v299
    %301 = vmatmul.bf16.gmra.mxu0 %v261
    %v302 = vpop.f32.mrf.mxu0
    %v303 = vadd.f32 0.0, %v302
    %v304 = vpop.f32.mrf.mxu0
    %v305 = vadd.f32 0.0, %v304
    %306 = vmatmul.bf16.gmra.mxu0 %v262
    %v307 = vpop.f32.mrf.mxu0
    %v308 = vadd.f32 0.0, %v307
    %v309 = vpop.f32.mrf.mxu0
    %v310 = vadd.f32 0.0, %v309
    %311 = vmatmul.bf16.gmra.mxu0 %v263
    %v312 = vpop.f32.mrf.mxu0
    %v313 = vadd.f32 0.0, %v312
    %v314 = vpop.f32.mrf.mxu0
    %v315 = vadd.f32 0.0, %v314
    %316 = vmatmul.bf16.gmra.mxu0 %v264
    %v317 = vpop.f32.mrf.mxu0
    %v318 = vadd.f32 0.0, %v317
    %v319 = vpop.f32.mrf.mxu0
    %v320 = vadd.f32 0.0, %v319
    %321 = vdwg.mxu0
    %v322 = vadd.f32 %v193, %v283
    %v323 = vadd.f32 %v194, %v285
    %v324 = vadd.f32 %v195, %v288
    %v325 = vadd.f32 %v196, %v290
    %v326 = vadd.f32 %v197, %v293
    %v327 = vadd.f32 %v198, %v295
    %v328 = vadd.f32 %v199, %v298
    %v329 = vadd.f32 %v200, %v300
    %v330 = vadd.f32 %v201, %v303
    %v331 = vadd.f32 %v202, %v305
    %v332 = vadd.f32 %v203, %v308
    %v333 = vadd.f32 %v204, %v310
    %v334 = vadd.f32 %v205, %v313
    %v335 = vadd.f32 %v206, %v315
    %v336 = vadd.f32 %v207, %v318
    %v337 = vadd.f32 %v208, %v320
    %338 = vst [vmem:[#allocation2] sm:$0xff] %v322
    %339 = vst [vmem:[#allocation2 + $0x8] sm:$0xff] %v323
    %340 = vst [vmem:[#allocation2 + $0x10] sm:$0xff] %v324
    %341 = vst [vmem:[#allocation2 + $0x18] sm:$0xff] %v325
    %342 = vst [vmem:[#allocation2 + $0x20] sm:$0xff] %v326
    %343 = vst [vmem:[#allocation2 + $0x28] sm:$0xff] %v327
    %344 = vst [vmem:[#allocation2 + $0x30] sm:$0xff] %v328
    %345 = vst [vmem:[#allocation2 + $0x38] sm:$0xff] %v329
    %346 = vst [vmem:[#allocation2 + $0x40] sm:$0xff] %v330
    %347 = vst [vmem:[#allocation2 + $0x48] sm:$0xff] %v331
    %348 = vst [vmem:[#allocation2 + $0x50] sm:$0xff] %v332
    %349 = vst [vmem:[#allocation2 + $0x58] sm:$0xff] %v333
    %350 = vst [vmem:[#allocation2 + $0x60] sm:$0xff] %v334
    %351 = vst [vmem:[#allocation2 + $0x68] sm:$0xff] %v335
    %352 = vst [vmem:[#allocation2 + $0x70] sm:$0xff] %v336
    %353 = vst [vmem:[#allocation2 + $0x78] sm:$0xff] %v337
    // Predicated region
    $region14: #{tpu_custom_call.1} parent=1 // pred_check
      %p354 = pneg %p51
    $region15: #{tpu_custom_call.1} parent=1 // pred_check_branch
      %356 = sbr.rel (%p354) target = $region17
    $region16: #{tpu_custom_call.1} parent=1 // pred_region
      %v357 = vld [vmem:[#allocation2] sm:$0xff]
      %v358 = vld [vmem:[#allocation2 + $0x8] sm:$0xff]
      %v359 = vld [vmem:[#allocation2 + $0x10] sm:$0xff]
      %v360 = vld [vmem:[#allocation2 + $0x18] sm:$0xff]
      %v361 = vld [vmem:[#allocation2 + $0x20] sm:$0xff]
      %v362 = vld [vmem:[#allocation2 + $0x28] sm:$0xff]
      %v363 = vld [vmem:[#allocation2 + $0x30] sm:$0xff]
      %v364 = vld [vmem:[#allocation2 + $0x38] sm:$0xff]
      %v365 = vld [vmem:[#allocation2 + $0x40] sm:$0xff]
      %v366 = vld [vmem:[#allocation2 + $0x48] sm:$0xff]
      %v367 = vld [vmem:[#allocation2 + $0x50] sm:$0xff]
      %v368 = vld [vmem:[#allocation2 + $0x58] sm:$0xff]
      %v369 = vld [vmem:[#allocation2 + $0x60] sm:$0xff]
      %v370 = vld [vmem:[#allocation2 + $0x68] sm:$0xff]
      %v371 = vld [vmem:[#allocation2 + $0x70] sm:$0xff]
      %v372 = vld [vmem:[#allocation2 + $0x78] sm:$0xff]
      %373 = vst [vmem:[#allocation3] sm:$0xff] %v357
      %374 = vst [vmem:[#allocation3 + $0x8] sm:$0xff] %v358
      %375 = vst [vmem:[#allocation3 + $0x10] sm:$0xff] %v359
      %376 = vst [vmem:[#allocation3 + $0x18] sm:$0xff] %v360
      %377 = vst [vmem:[#allocation3 + $0x20] sm:$0xff] %v361
      %378 = vst [vmem:[#allocation3 + $0x28] sm:$0xff] %v362
      %379 = vst [vmem:[#allocation3 + $0x30] sm:$0xff] %v363
      %380 = vst [vmem:[#allocation3 + $0x38] sm:$0xff] %v364
      %381 = vst [vmem:[#allocation3 + $0x40] sm:$0xff] %v365
      %382 = vst [vmem:[#allocation3 + $0x48] sm:$0xff] %v366
      %383 = vst [vmem:[#allocation3 + $0x50] sm:$0xff] %v367
      %384 = vst [vmem:[#allocation3 + $0x58] sm:$0xff] %v368
      %385 = vst [vmem:[#allocation3 + $0x60] sm:$0xff] %v369
      %386 = vst [vmem:[#allocation3 + $0x68] sm:$0xff] %v370
      %387 = vst [vmem:[#allocation3 + $0x70] sm:$0xff] %v371
      %388 = vst [vmem:[#allocation3 + $0x78] sm:$0xff] %v372
    $region17: #{tpu_custom_call.1} parent=1 // pred_fallthru
      _
    // Predicated region
    $region18: #{tpu_custom_call.1} parent=1 // pred_check
      _
    $region19: #{tpu_custom_call.1} parent=1 // pred_check_branch
      %390 = sbr.rel (0) target = $region21
    $region20: #{tpu_custom_call.1} parent=1 // pred_region
      %392 = vsyncadd [#allocation4], 0
      %s393 = sshll.u32 [#allocation3], 4
      %s394 = int_to_ptr.vmem [resolvable:$true] %s393
      %s395 = sshll.u32 %s2, 4
      %s396 = int_to_ptr.hbm [resolvable:$true] %s395
      %401 = dma.vmem_to_hbm [thread:$0]  %s394, 2048, %s396, [#allocation4], 128, 128, 8
    $region21: #{tpu_custom_call.1} parent=1 // pred_fallthru
      _
    // Predicated region
    $region22: #{tpu_custom_call.1} parent=1 // pred_check
      _
    $region23: #{tpu_custom_call.1} parent=1 // pred_check_branch
      %403 = sbr.rel (0) target = $region25
    $region24: #{tpu_custom_call.1} parent=1 // pred_region
      %405 = dma.done [#allocation4], 2048
    $region25: #{tpu_custom_call.1} parent=1 // pred_fallthru
      _
    %406 = vsyncpa [#allocation4], 1

</llo_original>
